<compile_context>
chip_gen: v6e
topology: v6e:2x2x1
jax: 0.10.0
libtpu: 0.0.40
codegen_flags: <defaults>
</compile_context>

<pallas_src>
import jax
import jax.numpy as jnp
from jax.experimental import pallas as pl
from jax.experimental.pallas import tpu as pltpu

LN_EPS = 1e-5   # torch.nn.LayerNorm default
HIDDEN = 64

# column layout of the packed per-feature parameter block (shape [HIDDEN, 8])
_B1, _G1, _BE1, _B2, _G2, _BE2 = range(6)


def _template_kernel(x_ref, w1_ref, w2_ref, w3_ref, vec_ref, o_ref):
    vecs = vec_ref[...]                                          # (64, 8) f32
    b1, g1, be1 = vecs[:, _B1:_B1 + 1], vecs[:, _G1:_G1 + 1], vecs[:, _BE1:_BE1 + 1]
    b2, g2, be2 = vecs[:, _B2:_B2 + 1], vecs[:, _G2:_G2 + 1], vecs[:, _BE2:_BE2 + 1]

    def ln_relu_bf16(h, bias, g, be):
        # LayerNorm over the feature axis (= sublane axis 0), stats in f32;
        # affine + ReLU in f32; result cast to bf16 for the next MXU matmul.
        h = h + bias
        mu = jnp.mean(h, axis=0, keepdims=True)
        c = h - mu
        var = jnp.mean(c * c, axis=0, keepdims=True)
        h = c * jax.lax.rsqrt(var + LN_EPS) * g + be
        return jnp.maximum(h, 0.0).astype(jnp.bfloat16)

    x = x_ref[...].astype(jnp.bfloat16)                          # (TM, D)
    w1 = w1_ref[...]                                             # (64, D)  bf16 (pre-cast)
    w2 = w2_ref[...]                                             # (64, 64) bf16
    w3 = w3_ref[...]                                             # (1, 64)  bf16

    # Layer 1:  h[f, t] = sum_k W1[f, k] * x[t, k]   (A @ B^T on the MXU)
    h = jax.lax.dot_general(w1, x, (((1,), (1,)), ((), ())),
                            preferred_element_type=jnp.float32)  # (64, TM) f32
    h = ln_relu_bf16(h, b1, g1, be1)                             # (64, TM) bf16

    # Layer 2: plain matmul, lane-dense (64, TM) output
    h = jnp.dot(w2, h, preferred_element_type=jnp.float32)       # (64, TM) f32
    h = ln_relu_bf16(h, b2, g2, be2)                             # (64, TM) bf16

    # Head Linear(64, 1, bias=False) as a (1,64)@(64,TM) MXU matmul.
    # Result is a lane-dense (1, TM) row -> unmasked, full-width stores.
    o_ref[...] = jnp.dot(w3, h, preferred_element_type=jnp.float32)


def _round_up(n, m):
    return ((n + m - 1) // m) * m


def _choose_tile(batch, block_rows):
    """Batch tile: multiple of 128; >=2 grid blocks whenever batch allows
    (v7x has 2 TensorCores that split the 'parallel' grid axis)."""
    half = _round_up(max((batch + 1) // 2, 1), 128)
    return max(128, min(block_rows, half))


def _run_blocks(x_arr, params, tm, n_blocks):
    """Run the kernel over n_blocks tiles of tm rows read from x_arr."""
    d = x_arr.shape[1]
    return pl.pallas_call(
        _template_kernel,
        out_shape=jax.ShapeDtypeStruct((1, tm * n_blocks), jnp.float32),
        grid=(n_blocks,),
        in_specs=[
            # x tiled over the batch; params have constant index_maps so they
            # are fetched once and stay resident across grid steps.
            pl.BlockSpec((tm, d), lambda i: (i, 0)),
            pl.BlockSpec((HIDDEN, d), lambda i: (0, 0)),
            pl.BlockSpec((HIDDEN, HIDDEN), lambda i: (0, 0)),
            pl.BlockSpec((1, HIDDEN), lambda i: (0, 0)),
            pl.BlockSpec((HIDDEN, 8), lambda i: (0, 0)),
        ],
        out_specs=pl.BlockSpec((1, tm), lambda i: (0, i)),
        compiler_params=pltpu.CompilerParams(
            dimension_semantics=("parallel",)),   # megacore split on v7x
    )(x_arr, params["w1"], params["w2"], params["w3_row"], params["vecs"])


def template_forward(x, params, block_rows=4096):
    """x: [B, input_dim] float32  ->  [B, 1] float32.

    block_rows: sweep in {2048, 4096, 8192}. At the default 4096 the VMEM
    working set is ~8 MiB (double-buffered x tile + four (64, TM) f32 temps),
    well under the 32 MiB default scoped VMEM on every generation; raise
    vmem_limit_bytes before pushing far above 8192.
    """
    B, _ = x.shape
    tm = _choose_tile(B, block_rows)

    n_main = B // tm
    b_main = n_main * tm
    pieces = []

    if n_main > 0:
        # Main call reads the aligned prefix of x in place (no copy / pad).
        out_main = _run_blocks(x, params, tm, n_main)            # (1, b_main)
        pieces.append(out_main[0])

    rem = B - b_main
    if rem > 0:
        # Only the small tail slice (< tm rows) gets padded.
        tail_pad = _round_up(rem, 128)
        x_tail = x[b_main:]
        if tail_pad != rem:
            x_tail = jnp.pad(x_tail, ((0, tail_pad - rem), (0, 0)))
        out_tail = _run_blocks(x_tail, params, tail_pad, 1)      # (1, tail_pad)
        pieces.append(out_tail[0, :rem])

    y = pieces[0] if len(pieces) == 1 else jnp.concatenate(pieces, axis=0)
    return y.reshape(B, 1)


# ----------------------- parameter setup (plain JAX glue) -----------------------

def _spectral_normalize(w_out_in, key, n_iter=30, eps=1e-12):
    """Divide W ([out, in], PyTorch layout) by its top singular value
    estimated with power iteration (mirrors nn.utils.spectral_norm)."""
    u = jax.random.normal(key, (w_out_in.shape[0],), dtype=jnp.float32)
    u = u / (jnp.linalg.norm(u) + eps)
    v = None
    for _ in range(n_iter):
        v = w_out_in.T @ u
        v = v / (jnp.linalg.norm(v) + eps)
        u = w_out_in @ v
        u = u / (jnp.linalg.norm(u) + eps)
    sigma = u @ (w_out_in @ v)
    return w_out_in / sigma


def _linear_init(key, fan_in, fan_out, bias=True):
    """PyTorch nn.Linear default init: U(-1/sqrt(fan_in), 1/sqrt(fan_in))."""
    kw, kb = jax.random.split(key)
    bound = 1.0 / jnp.sqrt(float(fan_in))
    w = jax.random.uniform(kw, (fan_out, fan_in), jnp.float32, -bound, bound)
    b = (jax.random.uniform(kb, (fan_out,), jnp.float32, -bound, bound)
         if bias else None)
    return w, b


def make_params(input_dim, key):
    k1, k2, k3, s1, s2, s3 = jax.random.split(key, 6)

    w1, b1 = _linear_init(k1, input_dim, HIDDEN)
    w2, b2 = _linear_init(k2, HIDDEN, HIDDEN)
    w3, _ = _linear_init(k3, HIDDEN, 1, bias=False)

    # spectral norm on every linear weight (Mlp spectral_norm=True + outer head)
    # TODO(synk): torch.nn.utils.spectral_norm uses 1 power iteration per
    # forward with persistent u/v; here sigma is estimated once at setup.
    w1 = _spectral_normalize(w1, s1)
    w2 = _spectral_normalize(w2, s2)
    w3 = _spectral_normalize(w3, s3)

    ones = jnp.ones((HIDDEN,), jnp.float32)
    zeros = jnp.zeros((HIDDEN,), jnp.float32)
    # pack per-feature f32 vectors into a single [64, 8] block (column order
    # must match the _B1.._BE2 constants used by the kernel)
    vecs = jnp.stack([b1, ones, zeros, b2, ones, zeros, zeros, zeros], axis=1)

    # matmul weights pre-cast to bf16 once (kernel uses them as-is);
    # PyTorch [out, in] layout is kept (kernel computes W @ x^T / W @ h).
    return {"w1": w1.astype(jnp.bfloat16),
            "w2": w2.astype(jnp.bfloat16),
            "w3_row": w3.astype(jnp.bfloat16),        # (1, 64) bf16 row
            "vecs": vecs}


# ----------------------------------- main ---------------------------------------

if __name__ == "__main__":
    # TODO(synk): Mlp's hidden activation is assumed to be ReLU (common default
    # for this discriminator Mlp); swap jnp.maximum(.,0) for tanh if needed.
    key = jax.random.PRNGKey(0)
    k_params, k_x1, k_x2 = jax.random.split(key, 3)

    input_dim = 32
    params = make_params(input_dim, k_params)

    # pure-JAX reference of the same math (same bf16 matmul inputs, f32 acc)
    def ref(x, p):
        v = p["vecs"]
        b1, g1, be1 = v[:, _B1], v[:, _G1], v[:, _BE1]
        b2, g2, be2 = v[:, _B2], v[:, _G2], v[:, _BE2]

        def ln(h, g, b):
            mu = h.mean(-1, keepdims=True)
            var = ((h - mu) ** 2).mean(-1, keepdims=True)
            return (h - mu) * jax.lax.rsqrt(var + LN_EPS) * g + b

        h = jnp.dot(x.astype(jnp.bfloat16), p["w1"].T,
                    preferred_element_type=jnp.float32) + b1
        h = jnp.maximum(ln(h, g1, be1), 0.0).astype(jnp.bfloat16)
        h = jnp.dot(h, p["w2"].T, preferred_element_type=jnp.float32) + b2
        h = jnp.maximum(ln(h, g2, be2), 0.0).astype(jnp.bfloat16)
        return jnp.dot(h, p["w3_row"].T, preferred_element_type=jnp.float32)

    # 1) small batch (tail-only path)
    x1 = jax.random.normal(k_x1, (8, input_dim), jnp.float32)
    y1 = jax.block_until_ready(template_forward(x1, params))
    assert y1.shape == (8, 1) and y1.dtype == jnp.float32
    r1 = ref(x1, params)
    assert jnp.allclose(y1, r1, atol=2e-2, rtol=2e-2), \
        float(jnp.max(jnp.abs(y1 - r1)))

    # 2) misaligned batch (main blocks + small padded tail path)
    x2 = jax.random.normal(k_x2, (300, input_dim), jnp.float32)
    y2 = jax.block_until_ready(template_forward(x2, params))
    assert y2.shape == (300, 1) and y2.dtype == jnp.float32
    r2 = ref(x2, params)
    assert jnp.allclose(y2, r2, atol=2e-2, rtol=2e-2), \
        float(jnp.max(jnp.abs(y2 - r2)))

    print("KERNEL_OK")
</pallas_src>

<mosaic_0001>
module attributes {stable_mosaic.version = 11 : i64} {
  func.func @_template_kernel(%arg0: i32, %arg1: memref<128x32xf32, #tpu.memory_space<vmem>>, %arg2: memref<64x32xbf16, #tpu.memory_space<vmem>>, %arg3: memref<64x64xbf16, #tpu.memory_space<vmem>>, %arg4: memref<1x64xbf16, #tpu.memory_space<vmem>>, %arg5: memref<64x8xf32, #tpu.memory_space<vmem>>, %arg6: memref<1x128xf32, #tpu.memory_space<vmem>>) attributes {dimension_semantics = [#tpu.dimension_semantics<parallel>], iteration_bounds = array<i64: 1>, scalar_prefetch = 0 : i64, scratch_operands = 0 : i64, tpu.core_type = #tpu.core_type<tc>, window_params = [{transform_indices = @transform_0, window_bounds = array<i64: 128, 32>}, {pipeline_mode = #tpu.pipeline_mode<synchronous>, transform_indices = @transform_1, window_bounds = array<i64: 64, 32>}, {pipeline_mode = #tpu.pipeline_mode<synchronous>, transform_indices = @transform_2, window_bounds = array<i64: 64, 64>}, {pipeline_mode = #tpu.pipeline_mode<synchronous>, transform_indices = @transform_3, window_bounds = array<i64: 1, 64>}, {pipeline_mode = #tpu.pipeline_mode<synchronous>, transform_indices = @transform_4, window_bounds = array<i64: 64, 8>}, {transform_indices = @transform_5, window_bounds = array<i64: 1, 128>}]} {
    %c0 = arith.constant 0 : index
    %c0_0 = arith.constant 0 : index
    %0 = vector.load %arg5[%c0, %c0_0] : memref<64x8xf32, #tpu.memory_space<vmem>>, vector<64x8xf32>
    %1 = vector.extract_strided_slice %0 {offsets = [0, 0], sizes = [64, 1], strides = [1, 1]} : vector<64x8xf32> to vector<64x1xf32>
    %2 = vector.extract_strided_slice %0 {offsets = [0, 1], sizes = [64, 1], strides = [1, 1]} : vector<64x8xf32> to vector<64x1xf32>
    %3 = vector.extract_strided_slice %0 {offsets = [0, 2], sizes = [64, 1], strides = [1, 1]} : vector<64x8xf32> to vector<64x1xf32>
    %4 = vector.extract_strided_slice %0 {offsets = [0, 3], sizes = [64, 1], strides = [1, 1]} : vector<64x8xf32> to vector<64x1xf32>
    %5 = vector.extract_strided_slice %0 {offsets = [0, 4], sizes = [64, 1], strides = [1, 1]} : vector<64x8xf32> to vector<64x1xf32>
    %6 = vector.extract_strided_slice %0 {offsets = [0, 5], sizes = [64, 1], strides = [1, 1]} : vector<64x8xf32> to vector<64x1xf32>
    %c0_1 = arith.constant 0 : index
    %c0_2 = arith.constant 0 : index
    %7 = vector.load %arg1[%c0_1, %c0_2] : memref<128x32xf32, #tpu.memory_space<vmem>>, vector<128x32xf32>
    %8 = arith.truncf %7 : vector<128x32xf32> to vector<128x32xbf16>
    %c0_3 = arith.constant 0 : index
    %c0_4 = arith.constant 0 : index
    %9 = vector.load %arg2[%c0_3, %c0_4] : memref<64x32xbf16, #tpu.memory_space<vmem>>, vector<64x32xbf16>
    %c0_5 = arith.constant 0 : index
    %c0_6 = arith.constant 0 : index
    %10 = vector.load %arg3[%c0_5, %c0_6] : memref<64x64xbf16, #tpu.memory_space<vmem>>, vector<64x64xbf16>
    %c0_7 = arith.constant 0 : index
    %c0_8 = arith.constant 0 : index
    %11 = vector.load %arg4[%c0_7, %c0_8] : memref<1x64xbf16, #tpu.memory_space<vmem>>, vector<1x64xbf16>
    %cst = arith.constant dense<0.000000e+00> : vector<64x128xf32>
    %12 = tpu.matmul %9, %8, %cst {dimension_numbers = #tpu.dot_dimension_numbers<[1], [1], [0], [0], [0, 0, 1, 0], [], []>} : vector<64x32xbf16>, vector<128x32xbf16>, vector<64x128xf32> -> vector<64x128xf32>
    %13 = vector.broadcast %1 : vector<64x1xf32> to vector<64x128xf32>
    %14 = arith.addf %12, %13 : vector<64x128xf32>
    %cst_9 = arith.constant dense<0.000000e+00> : vector<128xf32>
    %15 = vector.multi_reduction <add>, %14, %cst_9 [0] : vector<64x128xf32> to vector<128xf32>
    %16 = vector.shape_cast %15 : vector<128xf32> to vector<1x128xf32>
    %cst_10 = arith.constant 6.400000e+01 : f32
    %17 = vector.broadcast %cst_10 : f32 to vector<1x128xf32>
    %18 = arith.divf %16, %17 : vector<1x128xf32>
    %19 = vector.broadcast %18 : vector<1x128xf32> to vector<64x128xf32>
    %20 = arith.subf %14, %19 : vector<64x128xf32>
    %21 = arith.mulf %20, %20 : vector<64x128xf32>
    %cst_11 = arith.constant dense<0.000000e+00> : vector<128xf32>
    %22 = vector.multi_reduction <add>, %21, %cst_11 [0] : vector<64x128xf32> to vector<128xf32>
    %23 = vector.shape_cast %22 : vector<128xf32> to vector<1x128xf32>
    %cst_12 = arith.constant 6.400000e+01 : f32
    %24 = vector.broadcast %cst_12 : f32 to vector<1x128xf32>
    %25 = arith.divf %23, %24 : vector<1x128xf32>
    %cst_13 = arith.constant 9.99999974E-6 : f32
    %26 = vector.broadcast %cst_13 : f32 to vector<1x128xf32>
    %27 = arith.addf %25, %26 : vector<1x128xf32>
    %28 = math.rsqrt %27 : vector<1x128xf32>
    %29 = vector.broadcast %28 : vector<1x128xf32> to vector<64x128xf32>
    %30 = arith.mulf %20, %29 : vector<64x128xf32>
    %31 = vector.broadcast %2 : vector<64x1xf32> to vector<64x128xf32>
    %32 = arith.mulf %30, %31 : vector<64x128xf32>
    %33 = vector.broadcast %3 : vector<64x1xf32> to vector<64x128xf32>
    %34 = arith.addf %32, %33 : vector<64x128xf32>
    %cst_14 = arith.constant 0.000000e+00 : f32
    %35 = vector.broadcast %cst_14 : f32 to vector<64x128xf32>
    %36 = arith.maximumf %34, %35 : vector<64x128xf32>
    %37 = arith.truncf %36 : vector<64x128xf32> to vector<64x128xbf16>
    %cst_15 = arith.constant dense<0.000000e+00> : vector<64x128xf32>
    %38 = tpu.matmul %10, %37, %cst_15 {dimension_numbers = #tpu.dot_dimension_numbers<[1], [0], [0], [1], [0, 0, 1, 1], [], []>} : vector<64x64xbf16>, vector<64x128xbf16>, vector<64x128xf32> -> vector<64x128xf32>
    %39 = vector.broadcast %4 : vector<64x1xf32> to vector<64x128xf32>
    %40 = arith.addf %38, %39 : vector<64x128xf32>
    %cst_16 = arith.constant dense<0.000000e+00> : vector<128xf32>
    %41 = vector.multi_reduction <add>, %40, %cst_16 [0] : vector<64x128xf32> to vector<128xf32>
    %42 = vector.shape_cast %41 : vector<128xf32> to vector<1x128xf32>
    %cst_17 = arith.constant 6.400000e+01 : f32
    %43 = vector.broadcast %cst_17 : f32 to vector<1x128xf32>
    %44 = arith.divf %42, %43 : vector<1x128xf32>
    %45 = vector.broadcast %44 : vector<1x128xf32> to vector<64x128xf32>
    %46 = arith.subf %40, %45 : vector<64x128xf32>
    %47 = arith.mulf %46, %46 : vector<64x128xf32>
    %cst_18 = arith.constant dense<0.000000e+00> : vector<128xf32>
    %48 = vector.multi_reduction <add>, %47, %cst_18 [0] : vector<64x128xf32> to vector<128xf32>
    %49 = vector.shape_cast %48 : vector<128xf32> to vector<1x128xf32>
    %cst_19 = arith.constant 6.400000e+01 : f32
    %50 = vector.broadcast %cst_19 : f32 to vector<1x128xf32>
    %51 = arith.divf %49, %50 : vector<1x128xf32>
    %cst_20 = arith.constant 9.99999974E-6 : f32
    %52 = vector.broadcast %cst_20 : f32 to vector<1x128xf32>
    %53 = arith.addf %51, %52 : vector<1x128xf32>
    %54 = math.rsqrt %53 : vector<1x128xf32>
    %55 = vector.broadcast %54 : vector<1x128xf32> to vector<64x128xf32>
    %56 = arith.mulf %46, %55 : vector<64x128xf32>
    %57 = vector.broadcast %5 : vector<64x1xf32> to vector<64x128xf32>
    %58 = arith.mulf %56, %57 : vector<64x128xf32>
    %59 = vector.broadcast %6 : vector<64x1xf32> to vector<64x128xf32>
    %60 = arith.addf %58, %59 : vector<64x128xf32>
    %cst_21 = arith.constant 0.000000e+00 : f32
    %61 = vector.broadcast %cst_21 : f32 to vector<64x128xf32>
    %62 = arith.maximumf %60, %61 : vector<64x128xf32>
    %63 = arith.truncf %62 : vector<64x128xf32> to vector<64x128xbf16>
    %cst_22 = arith.constant dense<0.000000e+00> : vector<1x128xf32>
    %64 = tpu.matmul %11, %63, %cst_22 {dimension_numbers = #tpu.dot_dimension_numbers<[1], [0], [0], [1], [0, 0, 1, 1], [], []>} : vector<1x64xbf16>, vector<64x128xbf16>, vector<1x128xf32> -> vector<1x128xf32>
    %c0_23 = arith.constant 0 : index
    %c0_24 = arith.constant 0 : index
    %65 = vector.load %arg6[%c0_23, %c0_24] : memref<1x128xf32, #tpu.memory_space<vmem>>, vector<1x128xf32>
    tpu.vector_store %arg6[%c0_23, %c0_24], %64 {strides = array<i32>} : memref<1x128xf32, #tpu.memory_space<vmem>>, vector<1x128xf32>,
    return
  }
  func.func @transform_0(%arg0: i32) -> (i32, i32) {
    %c0_i32 = arith.constant 0 : i32
    %c0_i32_0 = arith.constant 0 : i32
    return %arg0, %c0_i32 : i32, i32
  }
  func.func @transform_1(%arg0: i32) -> (i32, i32) {
    %c0_i32 = arith.constant 0 : i32
    %c0_i32_0 = arith.constant 0 : i32
    %c0_i32_1 = arith.constant 0 : i32
    return %c0_i32, %c0_i32_0 : i32, i32
  }
  func.func @transform_2(%arg0: i32) -> (i32, i32) {
    %c0_i32 = arith.constant 0 : i32
    %c0_i32_0 = arith.constant 0 : i32
    %c0_i32_1 = arith.constant 0 : i32
    return %c0_i32, %c0_i32_0 : i32, i32
  }
  func.func @transform_3(%arg0: i32) -> (i32, i32) {
    %c0_i32 = arith.constant 0 : i32
    %c0_i32_0 = arith.constant 0 : i32
    %c0_i32_1 = arith.constant 0 : i32
    return %c0_i32, %c0_i32_0 : i32, i32
  }
  func.func @transform_4(%arg0: i32) -> (i32, i32) {
    %c0_i32 = arith.constant 0 : i32
    %c0_i32_0 = arith.constant 0 : i32
    %c0_i32_1 = arith.constant 0 : i32
    return %c0_i32, %c0_i32_0 : i32, i32
  }
  func.func @transform_5(%arg0: i32) -> (i32, i32) {
    %c0_i32 = arith.constant 0 : i32
    %c0_i32_0 = arith.constant 0 : i32
    return %c0_i32, %arg0 : i32, i32
  }
}

</mosaic_0001>

<llo_original>
// kernel: tpu_custom_call.1
$region0: #{tpu_custom_call.1}
  #allocation0 [shape = 'u32[]', space=smem, size = 0x4, offset = 0x4, fixed_abs, tag = 'smem constant byte address 0x4 - core index']
  #allocation1 [shape = 'u32[144,128]{1,0:T(1,128)}', space=vmem, size = 0x12000, scoped, tag = 'internal scratch']
  %s0 = inlined_call_operand.vmem [shape: f32[128,32], index: 0, kind: input, shape index: {}]
  %s1 = inlined_call_operand.vmem [shape: bf16[64,32], index: 1, kind: input, shape index: {}]
  %s2 = inlined_call_operand.vmem [shape: bf16[64,64], index: 2, kind: input, shape index: {}]
  %s3 = inlined_call_operand.vmem [shape: bf16[1,64], index: 3, kind: input, shape index: {}]
  %s4 = inlined_call_operand.vmem [shape: f32[64,8], index: 4, kind: input, shape index: {}]
  %s5 = inlined_call_operand.hbm [shape: f32[1,128], index: 5, kind: output, shape index: {}]
  %s6 = sld [smem:[#allocation0]]
  $region30: #{tpu_custom_call.1} parent=0
    _
  %s8 = ssub.s32 1, %s6
  %s9 = scalar_select 0, %s8, %s6
  $region1: #{tpu_custom_call.1} parent=0
    #allocation2 [shape = 'u8[512]{0}', space=vmem, size = 0x400, scoped, tag = 'output window, operand 0, single buffered']
    #allocation3 [shape = 's32[1]{0}', space=sflag, size = 0x4, scoped, tag = 'scoped memory for tpu_custom_call.1']
    %10 = vsyncpa [#allocation3], 0
    // Predicated region
    $region2: #{tpu_custom_call.1} parent=1 // pred_check
      _
    $region3: #{tpu_custom_call.1} parent=1 // pred_check_branch
      %12 = sbr.rel (0) target = $region5
    $region4: #{tpu_custom_call.1} parent=1 // pred_region
      _
    $region5: #{tpu_custom_call.1} parent=1 // pred_fallthru
      _
    // Predicated region
    $region6: #{tpu_custom_call.1} parent=1 // pred_check
      _
    $region7: #{tpu_custom_call.1} parent=1 // pred_check_branch
      %14 = sbr.rel (0) target = $region9
    $region8: #{tpu_custom_call.1} parent=1 // pred_region
      _
    $region9: #{tpu_custom_call.1} parent=1 // pred_fallthru
      _
    // Predicated region
    $region10: #{tpu_custom_call.1} parent=1 // pred_check
      _
    $region11: #{tpu_custom_call.1} parent=1 // pred_check_branch
      %16 = sbr.rel (0) target = $region13
    $region12: #{tpu_custom_call.1} parent=1 // pred_region
      _
    $region13: #{tpu_custom_call.1} parent=1 // pred_fallthru
      _
    // Predicated region
    $region14: #{tpu_custom_call.1} parent=1 // pred_check
      _
    $region15: #{tpu_custom_call.1} parent=1 // pred_check_branch
      %18 = sbr.rel (0) target = $region17
    $region16: #{tpu_custom_call.1} parent=1 // pred_region
      _
    $region17: #{tpu_custom_call.1} parent=1 // pred_fallthru
      _
    // Predicated region
    $region18: #{tpu_custom_call.1} parent=1 // pred_check
      _
    $region19: #{tpu_custom_call.1} parent=1 // pred_check_branch
      %20 = sbr.rel (0) target = $region21
    $region20: #{tpu_custom_call.1} parent=1 // pred_region
      _
    $region21: #{tpu_custom_call.1} parent=1 // pred_fallthru
      _
    %v22 = vld [vmem:[%s4] sm:$0xff]
    %v23 = vld [vmem:[%s4 + $0x8] sm:$0xff]
    %v24 = vld [vmem:[%s4 + $0x10] sm:$0xff]
    %v25 = vld [vmem:[%s4 + $0x18] sm:$0xff]
    %v26 = vld [vmem:[%s4 + $0x20] sm:$0xff]
    %v27 = vld [vmem:[%s4 + $0x28] sm:$0xff]
    %v28 = vld [vmem:[%s4 + $0x30] sm:$0xff]
    %v29 = vld [vmem:[%s4 + $0x38] sm:$0xff]
    %v30 = vld [vmem:[%s0] sm:$0xff]
    %v31 = vld [vmem:[%s0 + $0x8] sm:$0xff]
    %v32 = vld [vmem:[%s0 + $0x10] sm:$0xff]
    %v33 = vld [vmem:[%s0 + $0x18] sm:$0xff]
    %v34 = vld [vmem:[%s0 + $0x20] sm:$0xff]
    %v35 = vld [vmem:[%s0 + $0x28] sm:$0xff]
    %v36 = vld [vmem:[%s0 + $0x30] sm:$0xff]
    %v37 = vld [vmem:[%s0 + $0x38] sm:$0xff]
    %v38 = vld [vmem:[%s0 + $0x40] sm:$0xff]
    %v39 = vld [vmem:[%s0 + $0x48] sm:$0xff]
    %v40 = vld [vmem:[%s0 + $0x50] sm:$0xff]
    %v41 = vld [vmem:[%s0 + $0x58] sm:$0xff]
    %v42 = vld [vmem:[%s0 + $0x60] sm:$0xff]
    %v43 = vld [vmem:[%s0 + $0x68] sm:$0xff]
    %v44 = vld [vmem:[%s0 + $0x70] sm:$0xff]
    %v45 = vld [vmem:[%s0 + $0x78] sm:$0xff]
    %v46 = vpack.c.bf16 %v31, %v30
    %v47 = vpack.c.bf16 %v33, %v32
    %v48 = vpack.c.bf16 %v35, %v34
    %v49 = vpack.c.bf16 %v37, %v36
    %v50 = vpack.c.bf16 %v39, %v38
    %v51 = vpack.c.bf16 %v41, %v40
    %v52 = vpack.c.bf16 %v43, %v42
    %v53 = vpack.c.bf16 %v45, %v44
    %v54 = vld [vmem:[%s1] sm:$0xf]
    %v55 = vld [vmem:[%s1 + $0x4] sm:$0xf]
    %v56 = vld [vmem:[%s1 + $0x8] sm:$0xf]
    %v57 = vld [vmem:[%s1 + $0xc] sm:$0xf]
    %v58 = vld [vmem:[%s1 + $0x10] sm:$0xf]
    %v59 = vld [vmem:[%s1 + $0x14] sm:$0xf]
    %v60 = vld [vmem:[%s1 + $0x18] sm:$0xf]
    %v61 = vld [vmem:[%s1 + $0x1c] sm:$0xf]
    %v62 = vld [vmem:[%s2] sm:$0xf]
    %v63 = vld [vmem:[%s2 + $0x4] sm:$0xf]
    %v64 = vld [vmem:[%s2 + $0x8] sm:$0xf]
    %v65 = vld [vmem:[%s2 + $0xc] sm:$0xf]
    %v66 = vld [vmem:[%s2 + $0x10] sm:$0xf]
    %v67 = vld [vmem:[%s2 + $0x14] sm:$0xf]
    %v68 = vld [vmem:[%s2 + $0x18] sm:$0xf]
    %v69 = vld [vmem:[%s2 + $0x1c] sm:$0xf]
    %v70 = vld [vmem:[%s3] sm:$0x1]
    %72 = vset.pattern.permute.xlu0 0
    %73 = vperm.xlu0 %72, %v22
    %v74 = vpop.permute.xlu0 %73
    %77 = vset.pattern.permute.xlu0 0
    %78 = vperm.xlu0 %77, %v23
    %v79 = vpop.permute.xlu0 %78
    %82 = vset.pattern.permute.xlu0 0
    %83 = vperm.xlu0 %82, %v24
    %v84 = vpop.permute.xlu0 %83
    %87 = vset.pattern.permute.xlu0 0
    %88 = vperm.xlu0 %87, %v25
    %v89 = vpop.permute.xlu0 %88
    %92 = vset.pattern.permute.xlu0 0
    %93 = vperm.xlu0 %92, %v26
    %v94 = vpop.permute.xlu0 %93
    %97 = vset.pattern.permute.xlu0 0
    %98 = vperm.xlu0 %97, %v27
    %v99 = vpop.permute.xlu0 %98
    %102 = vset.pattern.permute.xlu0 0
    %103 = vperm.xlu0 %102, %v28
    %v104 = vpop.permute.xlu0 %103
    %107 = vset.pattern.permute.xlu0 0
    %108 = vperm.xlu0 %107, %v29
    %v109 = vpop.permute.xlu0 %108
    %v119 = vunpack.c.l.b16 %v54
    %v120 = vunpack.c.l.b16 %v55
    %v121 = vunpack.c.l.b16 %v56
    %v122 = vunpack.c.l.b16 %v57
    %v123 = vunpack.c.l.b16 %v58
    %v124 = vunpack.c.l.b16 %v59
    %v125 = vunpack.c.l.b16 %v60
    %v126 = vunpack.c.l.b16 %v61
    %v127 = vpack.c.b16 %v120, %v119
    %v128 = vpack.c.b16 %v122, %v121
    %v129 = vpack.c.b16 %v124, %v123
    %v130 = vpack.c.b16 %v126, %v125
    %vm131 = vcmask 261120
    %v133 = vsel %vm131, %v127, 0
    %v136 = vsel %vm131, %v128, 0
    %v139 = vsel %vm131, %v129, 0
    %v142 = vsel %vm131, %v130, 0
    %v145 = vsel %vm131, %v46, 0
    %v148 = vsel %vm131, %v47, 0
    %v151 = vsel %vm131, %v48, 0
    %v154 = vsel %vm131, %v49, 0
    %v157 = vsel %vm131, %v50, 0
    %v160 = vsel %vm131, %v51, 0
    %v163 = vsel %vm131, %v52, 0
    %v166 = vsel %vm131, %v53, 0
    %168 = vmatprep.subr.bf16.mxu0 0
    %169 = vmatpush1.bf16.xpose.msra.mxu0 %v166
    %170 = vmatprep.subr.bf16.mxu0 0
    %171 = vmatpush1.bf16.xpose.msra.mxu0 %v163
    %172 = vmatprep.subr.bf16.mxu0 0
    %173 = vmatpush1.bf16.xpose.msra.mxu0 %v160
    %174 = vmatprep.subr.bf16.mxu0 0
    %175 = vmatpush1.bf16.xpose.msra.mxu0 %v157
    %176 = vmatprep.subr.bf16.mxu0 0
    %177 = vmatpush1.bf16.xpose.msra.mxu0 %v154
    %178 = vmatprep.subr.bf16.mxu0 0
    %179 = vmatpush1.bf16.xpose.msra.mxu0 %v151
    %180 = vmatprep.subr.bf16.mxu0 0
    %181 = vmatpush1.bf16.xpose.msra.mxu0 %v148
    %182 = vmatprep.subr.bf16.mxu0 0
    %183 = vmatpush1.bf16.xpose.msra.mxu0 %v145
    %184 = vmatprep.subr.bf16.mxu0 0
    %185 = vmatpush2.bf16.xpose.msra.mxu0 0
    %186 = vmatprep.subr.bf16.mxu0 0
    %187 = vmatpush2.bf16.xpose.msra.mxu0 0
    %188 = vmatprep.subr.bf16.mxu0 0
    %189 = vmatpush2.bf16.xpose.msra.mxu0 0
    %190 = vmatprep.subr.bf16.mxu0 0
    %191 = vmatpush2.bf16.xpose.msra.mxu0 0
    %192 = vmatprep.subr.bf16.mxu0 0
    %193 = vmatpush2.bf16.xpose.msra.mxu0 0
    %194 = vmatprep.subr.bf16.mxu0 0
    %195 = vmatpush2.bf16.xpose.msra.mxu0 0
    %196 = vmatprep.subr.bf16.mxu0 0
    %197 = vmatpush2.bf16.xpose.msra.mxu0 0
    %198 = vmatprep.subr.bf16.mxu0 0
    %199 = vmatpush2.bf16.xpose.msra.mxu0 0
    %200 = vmatprep.mubr.bf16.mxu0 0
    %201 = vmatmul.mubr.bf16.gmra.mxu0 %v133
    %v202 = vpop.f32.mrf.mxu0
    %v203 = vadd.f32 %v74, %v202
    %v204 = vpop.f32.mrf.mxu0
    %v205 = vpop.f32.mrf.mxu0
    %v206 = vadd.f32 %v79, %v205
    %v207 = vpop.f32.mrf.mxu0
    %208 = vmatprep.mubr.bf16.mxu0 0
    %209 = vmatmul.mubr.bf16.gmra.mxu0 %v136
    %v210 = vpop.f32.mrf.mxu0
    %v211 = vadd.f32 %v84, %v210
    %v212 = vpop.f32.mrf.mxu0
    %v213 = vpop.f32.mrf.mxu0
    %v214 = vadd.f32 %v89, %v213
    %v215 = vpop.f32.mrf.mxu0
    %216 = vmatprep.mubr.bf16.mxu0 0
    %217 = vmatmul.mubr.bf16.gmra.mxu0 %v139
    %v218 = vpop.f32.mrf.mxu0
    %v219 = vadd.f32 %v94, %v218
    %v220 = vpop.f32.mrf.mxu0
    %v221 = vpop.f32.mrf.mxu0
    %v222 = vadd.f32 %v99, %v221
    %v223 = vpop.f32.mrf.mxu0
    %224 = vmatprep.mubr.bf16.mxu0 0
    %225 = vmatmul.mubr.bf16.gmra.mxu0 %v142
    %v226 = vpop.f32.mrf.mxu0
    %v227 = vadd.f32 %v104, %v226
    %v228 = vpop.f32.mrf.mxu0
    %v229 = vpop.f32.mrf.mxu0
    %v230 = vadd.f32 %v109, %v229
    %v231 = vpop.f32.mrf.mxu0
    %232 = vdwg.mxu0
    %v233 = vadd.f32 %v203, %v206
    %v234 = vadd.f32 %v233, %v211
    %v235 = vadd.f32 %v234, %v214
    %v236 = vadd.f32 %v235, %v219
    %v237 = vadd.f32 %v236, %v222
    %v238 = vadd.f32 %v237, %v227
    %v239 = vadd.f32 %v238, %v230
    %v240 = vrot.slane %v239, 4
    %v241 = vadd.f32 %v239, %v240
    %v242 = vrot.slane %v241, 2
    %v243 = vadd.f32 %v241, %v242
    %v244 = vrot.slane %v243, 1
    %v245 = vadd.f32 %v243, %v244
    %v246 = vrcp.pop 64.0
    %v247 = vmul.f32 %v245, %v246
    %v248 = vsub.f32 %v203, %v247
    %v249 = vsub.f32 %v206, %v247
    %v250 = vsub.f32 %v211, %v247
    %v251 = vsub.f32 %v214, %v247
    %v252 = vsub.f32 %v219, %v247
    %v253 = vsub.f32 %v222, %v247
    %v254 = vsub.f32 %v227, %v247
    %v255 = vsub.f32 %v230, %v247
    %v256 = vmul.f32 %v248, %v248
    %v257 = vmul.f32 %v249, %v249
    %v258 = vmul.f32 %v250, %v250
    %v259 = vmul.f32 %v251, %v251
    %v260 = vmul.f32 %v252, %v252
    %v261 = vmul.f32 %v253, %v253
    %v262 = vmul.f32 %v254, %v254
    %v263 = vmul.f32 %v255, %v255
    %v264 = vadd.f32 %v256, %v257
    %v265 = vadd.f32 %v264, %v258
    %v266 = vadd.f32 %v265, %v259
    %v267 = vadd.f32 %v266, %v260
    %v268 = vadd.f32 %v267, %v261
    %v269 = vadd.f32 %v268, %v262
    %v270 = vadd.f32 %v269, %v263
    %v271 = vrot.slane %v270, 4
    %v272 = vadd.f32 %v270, %v271
    %v273 = vrot.slane %v272, 2
    %v274 = vadd.f32 %v272, %v273
    %v275 = vrot.slane %v274, 1
    %v276 = vadd.f32 %v274, %v275
    %v277 = vmul.f32 %v276, %v246
    %v278 = vadd.f32 %v277, 1e-05
    %v279 = vrsqrt.pop %v278
    %v280 = vmul.f32 %v248, %v279
    %v281 = vmul.f32 %v249, %v279
    %v282 = vmul.f32 %v250, %v279
    %v283 = vmul.f32 %v251, %v279
    %v284 = vmul.f32 %v252, %v279
    %v285 = vmul.f32 %v253, %v279
    %v286 = vmul.f32 %v254, %v279
    %v287 = vmul.f32 %v255, %v279
    %288 = vset.pattern.permute.xlu0 1
    %289 = vperm.xlu0 %288, %v22
    %v290 = vpop.permute.xlu0 %289
    %292 = vset.pattern.permute.xlu0 1
    %293 = vperm.xlu0 %292, %v23
    %v294 = vpop.permute.xlu0 %293
    %296 = vset.pattern.permute.xlu0 1
    %297 = vperm.xlu0 %296, %v24
    %v298 = vpop.permute.xlu0 %297
    %300 = vset.pattern.permute.xlu0 1
    %301 = vperm.xlu0 %300, %v25
    %v302 = vpop.permute.xlu0 %301
    %304 = vset.pattern.permute.xlu0 1
    %305 = vperm.xlu0 %304, %v26
    %v306 = vpop.permute.xlu0 %305
    %308 = vset.pattern.permute.xlu0 1
    %309 = vperm.xlu0 %308, %v27
    %v310 = vpop.permute.xlu0 %309
    %312 = vset.pattern.permute.xlu0 1
    %313 = vperm.xlu0 %312, %v28
    %v314 = vpop.permute.xlu0 %313
    %316 = vset.pattern.permute.xlu0 1
    %317 = vperm.xlu0 %316, %v29
    %v318 = vpop.permute.xlu0 %317
    %v320 = vmul.f32 %v280, %v290
    %v321 = vmul.f32 %v281, %v294
    %v322 = vmul.f32 %v282, %v298
    %v323 = vmul.f32 %v283, %v302
    %v324 = vmul.f32 %v284, %v306
    %v325 = vmul.f32 %v285, %v310
    %v326 = vmul.f32 %v286, %v314
    %v327 = vmul.f32 %v287, %v318
    %328 = vset.pattern.permute.xlu0 2
    %329 = vperm.xlu0 %328, %v22
    %v330 = vpop.permute.xlu0 %329
    %332 = vset.pattern.permute.xlu0 2
    %333 = vperm.xlu0 %332, %v23
    %v334 = vpop.permute.xlu0 %333
    %336 = vset.pattern.permute.xlu0 2
    %337 = vperm.xlu0 %336, %v24
    %v338 = vpop.permute.xlu0 %337
    %340 = vset.pattern.permute.xlu0 2
    %341 = vperm.xlu0 %340, %v25
    %v342 = vpop.permute.xlu0 %341
    %344 = vset.pattern.permute.xlu0 2
    %345 = vperm.xlu0 %344, %v26
    %v346 = vpop.permute.xlu0 %345
    %348 = vset.pattern.permute.xlu0 2
    %349 = vperm.xlu0 %348, %v27
    %v350 = vpop.permute.xlu0 %349
    %352 = vset.pattern.permute.xlu0 2
    %353 = vperm.xlu0 %352, %v28
    %v354 = vpop.permute.xlu0 %353
    %356 = vset.pattern.permute.xlu0 2
    %357 = vperm.xlu0 %356, %v29
    %v358 = vpop.permute.xlu0 %357
    %v360 = vadd.f32 %v320, %v330
    %v361 = vadd.f32 %v321, %v334
    %v362 = vadd.f32 %v322, %v338
    %v363 = vadd.f32 %v323, %v342
    %v364 = vadd.f32 %v324, %v346
    %v365 = vadd.f32 %v325, %v350
    %v366 = vadd.f32 %v326, %v354
    %v367 = vadd.f32 %v327, %v358
    %v368 = vmax.f32 %v360, 0.0
    %v369 = vmax.f32 %v361, 0.0
    %v370 = vmax.f32 %v362, 0.0
    %v371 = vmax.f32 %v363, 0.0
    %v372 = vmax.f32 %v364, 0.0
    %v373 = vmax.f32 %v365, 0.0
    %v374 = vmax.f32 %v366, 0.0
    %v375 = vmax.f32 %v367, 0.0
    %v376 = vpack.c.bf16 %v369, %v368
    %v377 = vpack.c.bf16 %v371, %v370
    %v378 = vpack.c.bf16 %v373, %v372
    %v379 = vpack.c.bf16 %v375, %v374
    %380 = vset.pattern.permute.xlu0 3
    %381 = vperm.xlu0 %380, %v22
    %v382 = vpop.permute.xlu0 %381
    %384 = vset.pattern.permute.xlu0 3
    %385 = vperm.xlu0 %384, %v23
    %v386 = vpop.permute.xlu0 %385
    %388 = vset.pattern.permute.xlu0 3
    %389 = vperm.xlu0 %388, %v24
    %v390 = vpop.permute.xlu0 %389
    %392 = vset.pattern.permute.xlu0 3
    %393 = vperm.xlu0 %392, %v25
    %v394 = vpop.permute.xlu0 %393
    %396 = vset.pattern.permute.xlu0 3
    %397 = vperm.xlu0 %396, %v26
    %v398 = vpop.permute.xlu0 %397
    %400 = vset.pattern.permute.xlu0 3
    %401 = vperm.xlu0 %400, %v27
    %v402 = vpop.permute.xlu0 %401
    %404 = vset.pattern.permute.xlu0 3
    %405 = vperm.xlu0 %404, %v28
    %v406 = vpop.permute.xlu0 %405
    %408 = vset.pattern.permute.xlu0 3
    %409 = vperm.xlu0 %408, %v29
    %v410 = vpop.permute.xlu0 %409
    %v420 = vunpack.c.l.b16 %v62
    %v421 = vunpack.c.l.b16 %v63
    %v422 = vunpack.c.l.b16 %v64
    %v423 = vunpack.c.l.b16 %v65
    %v424 = vunpack.c.l.b16 %v66
    %v425 = vunpack.c.l.b16 %v67
    %v426 = vunpack.c.l.b16 %v68
    %v427 = vunpack.c.l.b16 %v69
    %v428 = vpack.c.b16 %v421, %v420
    %v429 = vpack.c.b16 %v423, %v422
    %v430 = vpack.c.b16 %v425, %v424
    %v431 = vpack.c.b16 %v427, %v426
    %vm432 = vcmask 523264
    %v434 = vsel %vm432, %v428, 0
    %v437 = vsel %vm432, %v429, 0
    %v440 = vsel %vm432, %v430, 0
    %v443 = vsel %vm432, %v431, 0
    %445 = vmatprep.subr.bf16.mxu0 0
    %446 = vmatpush1.bf16.msra.mxu0 0
    %447 = vmatprep.subr.bf16.mxu0 0
    %448 = vmatpush1.bf16.msra.mxu0 0
    %449 = vmatprep.subr.bf16.mxu0 0
    %450 = vmatpush1.bf16.msra.mxu0 0
    %451 = vmatprep.subr.bf16.mxu0 0
    %452 = vmatpush1.bf16.msra.mxu0 0
    %453 = vmatprep.subr.bf16.mxu0 0
    %454 = vmatpush1.bf16.msra.mxu0 %v379
    %455 = vmatprep.subr.bf16.mxu0 0
    %456 = vmatpush1.bf16.msra.mxu0 %v378
    %457 = vmatprep.subr.bf16.mxu0 0
    %458 = vmatpush1.bf16.msra.mxu0 %v377
    %459 = vmatprep.subr.bf16.mxu0 0
    %460 = vmatpush1.bf16.msra.mxu0 %v376
    %461 = vmatprep.subr.bf16.mxu0 0
    %462 = vmatpush2.bf16.msra.mxu0 0
    %463 = vmatprep.subr.bf16.mxu0 0
    %464 = vmatpush2.bf16.msra.mxu0 0
    %465 = vmatprep.subr.bf16.mxu0 0
    %466 = vmatpush2.bf16.msra.mxu0 0
    %467 = vmatprep.subr.bf16.mxu0 0
    %468 = vmatpush2.bf16.msra.mxu0 0
    %469 = vmatprep.subr.bf16.mxu0 0
    %470 = vmatpush2.bf16.msra.mxu0 0
    %471 = vmatprep.subr.bf16.mxu0 0
    %472 = vmatpush2.bf16.msra.mxu0 0
    %473 = vmatprep.subr.bf16.mxu0 0
    %474 = vmatpush2.bf16.msra.mxu0 0
    %475 = vmatprep.subr.bf16.mxu0 0
    %476 = vmatpush2.bf16.msra.mxu0 0
    %477 = vmatprep.mubr.bf16.mxu0 0
    %478 = vmatmul.mubr.bf16.gmra.mxu0 %v434
    %v479 = vpop.f32.mrf.mxu0
    %v480 = vadd.f32 %v382, %v479
    %v481 = vpop.f32.mrf.mxu0
    %v482 = vpop.f32.mrf.mxu0
    %v483 = vadd.f32 %v386, %v482
    %v484 = vpop.f32.mrf.mxu0
    %485 = vmatprep.mubr.bf16.mxu0 0
    %486 = vmatmul.mubr.bf16.gmra.mxu0 %v437
    %v487 = vpop.f32.mrf.mxu0
    %v488 = vadd.f32 %v390, %v487
    %v489 = vpop.f32.mrf.mxu0
    %v490 = vpop.f32.mrf.mxu0
    %v491 = vadd.f32 %v394, %v490
    %v492 = vpop.f32.mrf.mxu0
    %493 = vmatprep.mubr.bf16.mxu0 0
    %494 = vmatmul.mubr.bf16.gmra.mxu0 %v440
    %v495 = vpop.f32.mrf.mxu0
    %v496 = vadd.f32 %v398, %v495
    %v497 = vpop.f32.mrf.mxu0
    %v498 = vpop.f32.mrf.mxu0
    %v499 = vadd.f32 %v402, %v498
    %v500 = vpop.f32.mrf.mxu0
    %501 = vmatprep.mubr.bf16.mxu0 0
    %502 = vmatmul.mubr.bf16.gmra.mxu0 %v443
    %v503 = vpop.f32.mrf.mxu0
    %v504 = vadd.f32 %v406, %v503
    %v505 = vpop.f32.mrf.mxu0
    %v506 = vpop.f32.mrf.mxu0
    %v507 = vadd.f32 %v410, %v506
    %v508 = vpop.f32.mrf.mxu0
    %509 = vdwg.mxu0
    %v510 = vadd.f32 %v480, %v483
    %v511 = vadd.f32 %v510, %v488
    %v512 = vadd.f32 %v511, %v491
    %v513 = vadd.f32 %v512, %v496
    %v514 = vadd.f32 %v513, %v499
    %v515 = vadd.f32 %v514, %v504
    %v516 = vadd.f32 %v515, %v507
    %v517 = vrot.slane %v516, 4
    %v518 = vadd.f32 %v516, %v517
    %v519 = vrot.slane %v518, 2
    %v520 = vadd.f32 %v518, %v519
    %v521 = vrot.slane %v520, 1
    %v522 = vadd.f32 %v520, %v521
    %v523 = vmul.f32 %v522, %v246
    %v524 = vsub.f32 %v480, %v523
    %v525 = vsub.f32 %v483, %v523
    %v526 = vsub.f32 %v488, %v523
    %v527 = vsub.f32 %v491, %v523
    %v528 = vsub.f32 %v496, %v523
    %v529 = vsub.f32 %v499, %v523
    %v530 = vsub.f32 %v504, %v523
    %v531 = vsub.f32 %v507, %v523
    %v532 = vmul.f32 %v524, %v524
    %v533 = vmul.f32 %v525, %v525
    %v534 = vmul.f32 %v526, %v526
    %v535 = vmul.f32 %v527, %v527
    %v536 = vmul.f32 %v528, %v528
    %v537 = vmul.f32 %v529, %v529
    %v538 = vmul.f32 %v530, %v530
    %v539 = vmul.f32 %v531, %v531
    %v540 = vadd.f32 %v532, %v533
    %v541 = vadd.f32 %v540, %v534
    %v542 = vadd.f32 %v541, %v535
    %v543 = vadd.f32 %v542, %v536
    %v544 = vadd.f32 %v543, %v537
    %v545 = vadd.f32 %v544, %v538
    %v546 = vadd.f32 %v545, %v539
    %v547 = vrot.slane %v546, 4
    %v548 = vadd.f32 %v546, %v547
    %v549 = vrot.slane %v548, 2
    %v550 = vadd.f32 %v548, %v549
    %v551 = vrot.slane %v550, 1
    %v552 = vadd.f32 %v550, %v551
    %v553 = vmul.f32 %v552, %v246
    %v554 = vadd.f32 %v553, 1e-05
    %v555 = vrsqrt.pop %v554
    %v556 = vmul.f32 %v524, %v555
    %v557 = vmul.f32 %v525, %v555
    %v558 = vmul.f32 %v526, %v555
    %v559 = vmul.f32 %v527, %v555
    %v560 = vmul.f32 %v528, %v555
    %v561 = vmul.f32 %v529, %v555
    %v562 = vmul.f32 %v530, %v555
    %v563 = vmul.f32 %v531, %v555
    %564 = vset.pattern.permute.xlu0 4
    %565 = vperm.xlu0 %564, %v22
    %v566 = vpop.permute.xlu0 %565
    %568 = vset.pattern.permute.xlu0 4
    %569 = vperm.xlu0 %568, %v23
    %v570 = vpop.permute.xlu0 %569
    %572 = vset.pattern.permute.xlu0 4
    %573 = vperm.xlu0 %572, %v24
    %v574 = vpop.permute.xlu0 %573
    %576 = vset.pattern.permute.xlu0 4
    %577 = vperm.xlu0 %576, %v25
    %v578 = vpop.permute.xlu0 %577
    %580 = vset.pattern.permute.xlu0 4
    %581 = vperm.xlu0 %580, %v26
    %v582 = vpop.permute.xlu0 %581
    %584 = vset.pattern.permute.xlu0 4
    %585 = vperm.xlu0 %584, %v27
    %v586 = vpop.permute.xlu0 %585
    %588 = vset.pattern.permute.xlu0 4
    %589 = vperm.xlu0 %588, %v28
    %v590 = vpop.permute.xlu0 %589
    %592 = vset.pattern.permute.xlu0 4
    %593 = vperm.xlu0 %592, %v29
    %v594 = vpop.permute.xlu0 %593
    %v596 = vmul.f32 %v556, %v566
    %v597 = vmul.f32 %v557, %v570
    %v598 = vmul.f32 %v558, %v574
    %v599 = vmul.f32 %v559, %v578
    %v600 = vmul.f32 %v560, %v582
    %v601 = vmul.f32 %v561, %v586
    %v602 = vmul.f32 %v562, %v590
    %v603 = vmul.f32 %v563, %v594
    %604 = vset.pattern.permute.xlu0 5
    %605 = vperm.xlu0 %604, %v22
    %v606 = vpop.permute.xlu0 %605
    %608 = vset.pattern.permute.xlu0 5
    %609 = vperm.xlu0 %608, %v23
    %v610 = vpop.permute.xlu0 %609
    %612 = vset.pattern.permute.xlu0 5
    %613 = vperm.xlu0 %612, %v24
    %v614 = vpop.permute.xlu0 %613
    %616 = vset.pattern.permute.xlu0 5
    %617 = vperm.xlu0 %616, %v25
    %v618 = vpop.permute.xlu0 %617
    %620 = vset.pattern.permute.xlu0 5
    %621 = vperm.xlu0 %620, %v26
    %v622 = vpop.permute.xlu0 %621
    %624 = vset.pattern.permute.xlu0 5
    %625 = vperm.xlu0 %624, %v27
    %v626 = vpop.permute.xlu0 %625
    %628 = vset.pattern.permute.xlu0 5
    %629 = vperm.xlu0 %628, %v28
    %v630 = vpop.permute.xlu0 %629
    %632 = vset.pattern.permute.xlu0 5
    %633 = vperm.xlu0 %632, %v29
    %v634 = vpop.permute.xlu0 %633
    %v636 = vadd.f32 %v596, %v606
    %v637 = vadd.f32 %v597, %v610
    %v638 = vadd.f32 %v598, %v614
    %v639 = vadd.f32 %v599, %v618
    %v640 = vadd.f32 %v600, %v622
    %v641 = vadd.f32 %v601, %v626
    %v642 = vadd.f32 %v602, %v630
    %v643 = vadd.f32 %v603, %v634
    %v644 = vmax.f32 %v636, 0.0
    %v645 = vmax.f32 %v637, 0.0
    %v646 = vmax.f32 %v638, 0.0
    %v647 = vmax.f32 %v639, 0.0
    %v648 = vmax.f32 %v640, 0.0
    %v649 = vmax.f32 %v641, 0.0
    %v650 = vmax.f32 %v642, 0.0
    %v651 = vmax.f32 %v643, 0.0
    %v652 = vpack.c.bf16 %v645, %v644
    %v653 = vpack.c.bf16 %v647, %v646
    %v654 = vpack.c.bf16 %v649, %v648
    %v655 = vpack.c.bf16 %v651, %v650
    %v657 = vsel %vm432, %v70, 0
    %659 = vmatprep.subr.bf16.mxu0 0
    %660 = vmatpush1.bf16.msra.mxu0 0
    %661 = vmatprep.subr.bf16.mxu0 0
    %662 = vmatpush1.bf16.msra.mxu0 0
    %663 = vmatprep.subr.bf16.mxu0 0
    %664 = vmatpush1.bf16.msra.mxu0 0
    %665 = vmatprep.subr.bf16.mxu0 0
    %666 = vmatpush1.bf16.msra.mxu0 0
    %667 = vmatprep.subr.bf16.mxu0 0
    %668 = vmatpush1.bf16.msra.mxu0 %v655
    %669 = vmatprep.subr.bf16.mxu0 0
    %670 = vmatpush1.bf16.msra.mxu0 %v654
    %671 = vmatprep.subr.bf16.mxu0 0
    %672 = vmatpush1.bf16.msra.mxu0 %v653
    %673 = vmatprep.subr.bf16.mxu0 0
    %674 = vmatpush1.bf16.msra.mxu0 %v652
    %675 = vmatprep.subr.bf16.mxu0 0
    %676 = vmatpush2.bf16.msra.mxu0 0
    %677 = vmatprep.subr.bf16.mxu0 0
    %678 = vmatpush2.bf16.msra.mxu0 0
    %679 = vmatprep.subr.bf16.mxu0 0
    %680 = vmatpush2.bf16.msra.mxu0 0
    %681 = vmatprep.subr.bf16.mxu0 0
    %682 = vmatpush2.bf16.msra.mxu0 0
    %683 = vmatprep.subr.bf16.mxu0 0
    %684 = vmatpush2.bf16.msra.mxu0 0
    %685 = vmatprep.subr.bf16.mxu0 0
    %686 = vmatpush2.bf16.msra.mxu0 0
    %687 = vmatprep.subr.bf16.mxu0 0
    %688 = vmatpush2.bf16.msra.mxu0 0
    %689 = vmatprep.subr.bf16.mxu0 0
    %690 = vmatpush2.bf16.msra.mxu0 0
    %691 = vmatprep.mubr.bf16.mxu0 0
    %692 = vmatmul.mubr.bf16.gmra.mxu0 %v657
    %v693 = vpop.f32.mrf.mxu0
    %v694 = vadd.f32 0.0, %v693
    %v695 = vpop.f32.mrf.mxu0
    %v696 = vpop.f32.mrf.mxu0
    %v697 = vpop.f32.mrf.mxu0
    %698 = vdwg.mxu0
    %699 = vst [vmem:[#allocation2] sm:$0x1] %v694
    // Predicated region
    $region22: #{tpu_custom_call.1} parent=1 // pred_check
      _
    $region23: #{tpu_custom_call.1} parent=1 // pred_check_branch
      %701 = sbr.rel (0) target = $region25
    $region24: #{tpu_custom_call.1} parent=1 // pred_region
      %s703 = ssub.s32 16, 16
      %704 = vsyncadd [#allocation3], %s703
      %s706 = sshll.u32 [#allocation2], 4
      %s707 = int_to_ptr.vmem [resolvable:$true] %s706
      %709 = dma.vmem_to_hbm [thread:$0]  %s707, 16, %s5, [#allocation3]
    $region25: #{tpu_custom_call.1} parent=1 // pred_fallthru
      _
    // Predicated region
    $region26: #{tpu_custom_call.1} parent=1 // pred_check
      _
    $region27: #{tpu_custom_call.1} parent=1 // pred_check_branch
      %711 = sbr.rel (0) target = $region29
    $region28: #{tpu_custom_call.1} parent=1 // pred_region
      %712 = dma.done [#allocation3], 16
    $region29: #{tpu_custom_call.1} parent=1 // pred_fallthru
      _
    %713 = vsyncpa [#allocation3], 1

</llo_original>
